<compile_context>
chip_gen: v5e
topology: v5e:2x2
jax: 0.10.0
libtpu: 0.0.40
codegen_flags: <defaults>
</compile_context>

<pallas_src>
import jax
import jax.numpy as jnp
from jax import lax
from jax.experimental import pallas as pl
from jax.experimental.pallas import tpu as pltpu


def _round_up(x, m):
    return ((x + m - 1) // m) * m


def rnn_kernel(tok_ref, emb_ref, wih_ref, whh_ref, bias_ref, wfc_ref, bfc_ref,
               h0_ref, out_ref, hlast_ref, pre_scratch):
    """Whole sequence in one grid point.

    Phase 0+1: one-hot(tokens) @ Emb  (MXU gather, exact row select), then the
               time-independent input projection X @ Wih + (b_ih+b_hh), both
               as single batched GEMMs over all T*Bp rows.
    Phase 2:   sequential recurrence h = tanh(pre[t] + h @ Whh); h written back
               in place over the consumed pre rows (no second scratch slab).
    Phase 3:   one GEMM  H_all(T*Bp,Hp) @ Wfc(Hp,Op) + b_fc  for all steps.
    """
    Bp = h0_ref.shape[0]              # padded batch (sublane multiple)
    TBp = tok_ref.shape[0]
    T = TBp // Bp                     # static trip count
    Vp = emb_ref.shape[0]             # padded vocab (lane multiple)

    # Phase 0+1: fused embedding gather + batched input projection.
    iota_v = lax.broadcasted_iota(jnp.int32, (TBp, Vp), 1)
    one_hot = (tok_ref[...] == iota_v).astype(jnp.float32)
    x = jnp.dot(one_hot, emb_ref[...], preferred_element_type=jnp.float32)
    pre_scratch[...] = (
        jnp.dot(x, wih_ref[...], preferred_element_type=jnp.float32)
        + bias_ref[...])

    # Phase 2: sequential recurrence (bounded unroll keeps LLO visibility
    # without blowing code size at large T).
    def step(t, h):
        row = pl.multiple_of(t * Bp, Bp)
        pre_t = pre_scratch[pl.ds(row, Bp), :]
        h_new = jnp.tanh(
            pre_t + jnp.dot(h, whh_ref[...],
                            preferred_element_type=jnp.float32))
        pre_scratch[pl.ds(row, Bp), :] = h_new      # reuse slab in place
        return h_new

    h_last = lax.fori_loop(0, T, step, h0_ref[...], unroll=min(T, 8))
    hlast_ref[...] = h_last

    # Phase 3: batched FC projection (time-independent -> single MXU GEMM).
    out_ref[...] = (
        jnp.dot(pre_scratch[...], wfc_ref[...],
                preferred_element_type=jnp.float32)
        + bfc_ref[...])


def rnn_forward(tokens, h0, params):
    """tokens: (B, T) int32, h0: (num_layers=1, B, H) float32.
    Returns (out, h) matching the PyTorch module: out (B, T, O), h (1, B, H)."""
    emb_table, wih_t, whh_t, bih, bhh, wfc_t, bfc = params
    B, T = tokens.shape
    V, E = emb_table.shape
    H = whh_t.shape[0]
    O = wfc_t.shape[1]

    # TPU-friendly padded sizes: batch -> 8 sublanes, feature dims -> 128 lanes.
    LANE, SUB = 128, 8
    Bp = _round_up(max(B, SUB), SUB)
    Vp = _round_up(V, LANE)
    Ep = _round_up(E, LANE)
    Hp = _round_up(H, LANE)
    Op = _round_up(O, LANE)

    # Only tiny int32 token glue remains in the wrapper; the embedding gather
    # itself happens inside the kernel (one-hot GEMM).
    tok_tb = jnp.transpose(tokens, (1, 0))                 # (T, B) time-major
    tok_pad = jnp.pad(tok_tb, ((0, 0), (0, Bp - B)))       # pad rows pick row 0
    tok_col = tok_pad.reshape(T * Bp, 1).astype(jnp.int32)

    # NOTE: on v6e/v7x one could cast emb/weights to bfloat16 here (keeping
    # f32 accumulation) for ~2x GEMM throughput; kept f32 so numerics match the
    # f32 reference within 1e-4 and the elementwise/tanh path stays f32 on v5e.
    emb_p = jnp.pad(emb_table, ((0, Vp - V), (0, Ep - E)))
    wih_p = jnp.pad(wih_t, ((0, Ep - E), (0, Hp - H)))
    whh_p = jnp.pad(whh_t, ((0, Hp - H), (0, Hp - H)))
    bias_p = jnp.pad(bih + bhh, ((0, 0), (0, Hp - H)))     # folded bias
    wfc_p = jnp.pad(wfc_t, ((0, Hp - H), (0, Op - O)))
    bfc_p = jnp.pad(bfc, ((0, 0), (0, Op - O)))
    h0_p = jnp.pad(h0[0], ((0, Bp - B), (0, Hp - H)))

    flops = 2 * T * Bp * (Vp * Ep + Ep * Hp + Hp * Hp + Hp * Op)
    bytes_accessed = 4 * (T * Bp * (1 + Op) + Vp * Ep + Ep * Hp + Hp * Hp
                          + Hp * Op + 2 * Bp * Hp + Hp + Op)

    # Explicit VMEM budget (resident arrays + scratch + in-kernel temporaries),
    # with 2x headroom — re-derived rather than relying on the scoped default
    # (16/32 MiB on v5e / v6e+v7x).
    resident = 4 * (T * Bp * (1 + Hp + Op) + Vp * Ep + Ep * Hp + Hp * Hp
                    + Hp * Op + 2 * Bp * Hp + Hp + Op)
    temps = 4 * T * Bp * (Vp + Ep)          # one_hot + x temporaries
    vmem_budget = int(min(100 << 20, max(8 << 20, 2 * (resident + temps))))

    out_flat, h_last = pl.pallas_call(
        rnn_kernel,
        out_shape=(
            jax.ShapeDtypeStruct((T * Bp, Op), jnp.float32),
            jax.ShapeDtypeStruct((Bp, Hp), jnp.float32),
        ),
        scratch_shapes=[
            pltpu.VMEM((T * Bp, Hp), jnp.float32),   # pre-acts, reused for h
        ],
        compiler_params=pltpu.CompilerParams(vmem_limit_bytes=vmem_budget),
        cost_estimate=pl.CostEstimate(
            flops=flops,
            transcendentals=T * Bp * Hp,
            bytes_accessed=bytes_accessed),
    )(tok_col, emb_p, wih_p, whh_p, bias_p, wfc_p, bfc_p, h0_p)

    out = out_flat.reshape(T, Bp, Op)[:, :B, :O]          # drop padding
    out = jnp.transpose(out, (1, 0, 2))                   # (B, T, O) batch_first
    h = h_last[:B, :H][None]                              # (1, B, H)
    return out, h


def init_params(key, input_dim, embedding_dim, hidden_dim, output_dim):
    ks = jax.random.split(key, 7)
    s_rnn = 1.0 / jnp.sqrt(hidden_dim)
    s_fc = 1.0 / jnp.sqrt(hidden_dim)
    emb = jax.random.normal(ks[0], (input_dim, embedding_dim), jnp.float32)
    # Weights stored pre-transposed so the kernel does x @ W^T as plain matmul.
    wih_t = jax.random.uniform(ks[1], (embedding_dim, hidden_dim), jnp.float32,
                               -s_rnn, s_rnn)
    whh_t = jax.random.uniform(ks[2], (hidden_dim, hidden_dim), jnp.float32,
                               -s_rnn, s_rnn)
    bih = jax.random.uniform(ks[3], (1, hidden_dim), jnp.float32, -s_rnn, s_rnn)
    bhh = jax.random.uniform(ks[4], (1, hidden_dim), jnp.float32, -s_rnn, s_rnn)
    wfc_t = jax.random.uniform(ks[5], (hidden_dim, output_dim), jnp.float32,
                               -s_fc, s_fc)
    bfc = jax.random.uniform(ks[6], (1, output_dim), jnp.float32, -s_fc, s_fc)
    return emb, wih_t, whh_t, bih, bhh, wfc_t, bfc


def reference_forward(tokens, h0, params):
    """Pure-JAX reference (same math as torch nn.Embedding + nn.RNN + nn.Linear)."""
    emb_table, wih_t, whh_t, bih, bhh, wfc_t, bfc = params
    embeds = jnp.take(emb_table, tokens, axis=0)  # (B, T, E)
    h = h0[0]
    outs = []
    for t in range(tokens.shape[1]):
        h = jnp.tanh(embeds[:, t] @ wih_t + h @ whh_t + bih + bhh)
        outs.append(h @ wfc_t + bfc)
    out = jnp.stack(outs, axis=1)
    return out, h[None]


if __name__ == "__main__":
    input_dim = 64       # vocab
    embedding_dim = 32
    hidden_dim = 32
    output_dim = 16
    B, T = 2, 8

    key = jax.random.PRNGKey(0)
    k_param, k_tok = jax.random.split(key)
    params = init_params(k_param, input_dim, embedding_dim, hidden_dim, output_dim)

    tokens = jax.random.randint(k_tok, (B, T), 0, input_dim, dtype=jnp.int32)
    h0 = jnp.zeros((1, B, hidden_dim), jnp.float32)   # == RNN.init_hidden(B)

    out, h = rnn_forward(tokens, h0, params)
    out = jax.block_until_ready(out)
    h = jax.block_until_ready(h)

    out_ref, h_ref = reference_forward(tokens, h0, params)
    assert out.shape == (B, T, output_dim) and h.shape == (1, B, hidden_dim)
    assert jnp.allclose(out, out_ref, atol=1e-4, rtol=1e-4)
    assert jnp.allclose(h, h_ref, atol=1e-4, rtol=1e-4)
    print("KERNEL_OK")
</pallas_src>

<mosaic_0001>
module attributes {stable_mosaic.version = 11 : i64} {
  func.func @rnn_kernel(%arg0: memref<64x1xi32, #tpu.memory_space<vmem>>, %arg1: memref<128x128xf32, #tpu.memory_space<vmem>>, %arg2: memref<128x128xf32, #tpu.memory_space<vmem>>, %arg3: memref<128x128xf32, #tpu.memory_space<vmem>>, %arg4: memref<1x128xf32, #tpu.memory_space<vmem>>, %arg5: memref<128x128xf32, #tpu.memory_space<vmem>>, %arg6: memref<1x128xf32, #tpu.memory_space<vmem>>, %arg7: memref<8x128xf32, #tpu.memory_space<vmem>>, %arg8: memref<64x128xf32, #tpu.memory_space<vmem>>, %arg9: memref<8x128xf32, #tpu.memory_space<vmem>>, %arg10: memref<64x128xf32, #tpu.memory_space<vmem>>) attributes {dimension_semantics = [], scalar_prefetch = 0 : i64, scratch_operands = 1 : i64, tpu.core_type = #tpu.core_type<tc>} {
    %0 = tpu.iota {dimensions = array<i32: 1>} : vector<64x128xi32>
    %c0 = arith.constant 0 : index
    %c0_0 = arith.constant 0 : index
    %1 = vector.load %arg0[%c0, %c0_0] : memref<64x1xi32, #tpu.memory_space<vmem>>, vector<64x1xi32>
    %2 = vector.broadcast %1 : vector<64x1xi32> to vector<64x128xi32>
    %3 = arith.cmpi eq, %2, %0 : vector<64x128xi32>
    %4 = arith.extui %3 : vector<64x128xi1> to vector<64x128xi32>
    %5 = arith.sitofp %4 : vector<64x128xi32> to vector<64x128xf32>
    %c0_1 = arith.constant 0 : index
    %c0_2 = arith.constant 0 : index
    %6 = vector.load %arg1[%c0_1, %c0_2] : memref<128x128xf32, #tpu.memory_space<vmem>>, vector<128x128xf32>
    %cst = arith.constant dense<0.000000e+00> : vector<64x128xf32>
    %7 = tpu.matmul %5, %6, %cst {dimension_numbers = #tpu.dot_dimension_numbers<[1], [0], [0], [1], [0, 0, 1, 1], [], []>} : vector<64x128xf32>, vector<128x128xf32>, vector<64x128xf32> -> vector<64x128xf32>
    %c0_3 = arith.constant 0 : index
    %c0_4 = arith.constant 0 : index
    %8 = vector.load %arg2[%c0_3, %c0_4] : memref<128x128xf32, #tpu.memory_space<vmem>>, vector<128x128xf32>
    %cst_5 = arith.constant dense<0.000000e+00> : vector<64x128xf32>
    %9 = tpu.matmul %7, %8, %cst_5 {dimension_numbers = #tpu.dot_dimension_numbers<[1], [0], [0], [1], [0, 0, 1, 1], [], []>} : vector<64x128xf32>, vector<128x128xf32>, vector<64x128xf32> -> vector<64x128xf32>
    %c0_6 = arith.constant 0 : index
    %c0_7 = arith.constant 0 : index
    %10 = vector.load %arg4[%c0_6, %c0_7] : memref<1x128xf32, #tpu.memory_space<vmem>>, vector<1x128xf32>
    %11 = vector.broadcast %10 : vector<1x128xf32> to vector<64x128xf32>
    %12 = arith.addf %9, %11 : vector<64x128xf32>
    %c0_8 = arith.constant 0 : index
    %c0_9 = arith.constant 0 : index
    %13 = vector.load %arg10[%c0_8, %c0_9] : memref<64x128xf32, #tpu.memory_space<vmem>>, vector<64x128xf32>
    tpu.vector_store %arg10[%c0_8, %c0_9], %12 {strides = array<i32>} : memref<64x128xf32, #tpu.memory_space<vmem>>, vector<64x128xf32>,
    %c0_10 = arith.constant 0 : index
    %c0_11 = arith.constant 0 : index
    %14 = vector.load %arg7[%c0_10, %c0_11] : memref<8x128xf32, #tpu.memory_space<vmem>>, vector<8x128xf32>
    %c0_i32 = arith.constant 0 : i32
    %c8_i32 = arith.constant 8 : i32
    %15 = arith.muli %c0_i32, %c8_i32 : i32
    %16 = tpu.assume_multiple %15, 8 : i32
    %17 = arith.index_cast %16 : i32 to index
    %c0_12 = arith.constant 0 : index
    %18 = vector.load %arg10[%17, %c0_12] : memref<64x128xf32, #tpu.memory_space<vmem>>, vector<8x128xf32>
    %c0_13 = arith.constant 0 : index
    %c0_14 = arith.constant 0 : index
    %19 = vector.load %arg3[%c0_13, %c0_14] : memref<128x128xf32, #tpu.memory_space<vmem>>, vector<128x128xf32>
    %cst_15 = arith.constant dense<0.000000e+00> : vector<8x128xf32>
    %20 = tpu.matmul %14, %19, %cst_15 {dimension_numbers = #tpu.dot_dimension_numbers<[1], [0], [0], [1], [0, 0, 1, 1], [], []>} : vector<8x128xf32>, vector<128x128xf32>, vector<8x128xf32> -> vector<8x128xf32>
    %21 = arith.addf %18, %20 : vector<8x128xf32>
    %22 = math.tanh %21 : vector<8x128xf32>
    %23 = arith.index_cast %16 : i32 to index
    %c0_16 = arith.constant 0 : index
    %24 = vector.load %arg10[%23, %c0_16] : memref<64x128xf32, #tpu.memory_space<vmem>>, vector<8x128xf32>
    tpu.vector_store %arg10[%23, %c0_16], %22 {strides = array<i32>} : memref<64x128xf32, #tpu.memory_space<vmem>>, vector<8x128xf32>,
    %c1_i32 = arith.constant 1 : i32
    %c8_i32_17 = arith.constant 8 : i32
    %25 = arith.muli %c1_i32, %c8_i32_17 : i32
    %26 = tpu.assume_multiple %25, 8 : i32
    %27 = arith.index_cast %26 : i32 to index
    %c0_18 = arith.constant 0 : index
    %28 = vector.load %arg10[%27, %c0_18] : memref<64x128xf32, #tpu.memory_space<vmem>>, vector<8x128xf32>
    %c0_19 = arith.constant 0 : index
    %c0_20 = arith.constant 0 : index
    %29 = vector.load %arg3[%c0_19, %c0_20] : memref<128x128xf32, #tpu.memory_space<vmem>>, vector<128x128xf32>
    %cst_21 = arith.constant dense<0.000000e+00> : vector<8x128xf32>
    %30 = tpu.matmul %22, %29, %cst_21 {dimension_numbers = #tpu.dot_dimension_numbers<[1], [0], [0], [1], [0, 0, 1, 1], [], []>} : vector<8x128xf32>, vector<128x128xf32>, vector<8x128xf32> -> vector<8x128xf32>
    %31 = arith.addf %28, %30 : vector<8x128xf32>
    %32 = math.tanh %31 : vector<8x128xf32>
    %33 = arith.index_cast %26 : i32 to index
    %c0_22 = arith.constant 0 : index
    %34 = vector.load %arg10[%33, %c0_22] : memref<64x128xf32, #tpu.memory_space<vmem>>, vector<8x128xf32>
    tpu.vector_store %arg10[%33, %c0_22], %32 {strides = array<i32>} : memref<64x128xf32, #tpu.memory_space<vmem>>, vector<8x128xf32>,
    %c2_i32 = arith.constant 2 : i32
    %c8_i32_23 = arith.constant 8 : i32
    %35 = arith.muli %c2_i32, %c8_i32_23 : i32
    %36 = tpu.assume_multiple %35, 8 : i32
    %37 = arith.index_cast %36 : i32 to index
    %c0_24 = arith.constant 0 : index
    %38 = vector.load %arg10[%37, %c0_24] : memref<64x128xf32, #tpu.memory_space<vmem>>, vector<8x128xf32>
    %c0_25 = arith.constant 0 : index
    %c0_26 = arith.constant 0 : index
    %39 = vector.load %arg3[%c0_25, %c0_26] : memref<128x128xf32, #tpu.memory_space<vmem>>, vector<128x128xf32>
    %cst_27 = arith.constant dense<0.000000e+00> : vector<8x128xf32>
    %40 = tpu.matmul %32, %39, %cst_27 {dimension_numbers = #tpu.dot_dimension_numbers<[1], [0], [0], [1], [0, 0, 1, 1], [], []>} : vector<8x128xf32>, vector<128x128xf32>, vector<8x128xf32> -> vector<8x128xf32>
    %41 = arith.addf %38, %40 : vector<8x128xf32>
    %42 = math.tanh %41 : vector<8x128xf32>
    %43 = arith.index_cast %36 : i32 to index
    %c0_28 = arith.constant 0 : index
    %44 = vector.load %arg10[%43, %c0_28] : memref<64x128xf32, #tpu.memory_space<vmem>>, vector<8x128xf32>
    tpu.vector_store %arg10[%43, %c0_28], %42 {strides = array<i32>} : memref<64x128xf32, #tpu.memory_space<vmem>>, vector<8x128xf32>,
    %c3_i32 = arith.constant 3 : i32
    %c8_i32_29 = arith.constant 8 : i32
    %45 = arith.muli %c3_i32, %c8_i32_29 : i32
    %46 = tpu.assume_multiple %45, 8 : i32
    %47 = arith.index_cast %46 : i32 to index
    %c0_30 = arith.constant 0 : index
    %48 = vector.load %arg10[%47, %c0_30] : memref<64x128xf32, #tpu.memory_space<vmem>>, vector<8x128xf32>
    %c0_31 = arith.constant 0 : index
    %c0_32 = arith.constant 0 : index
    %49 = vector.load %arg3[%c0_31, %c0_32] : memref<128x128xf32, #tpu.memory_space<vmem>>, vector<128x128xf32>
    %cst_33 = arith.constant dense<0.000000e+00> : vector<8x128xf32>
    %50 = tpu.matmul %42, %49, %cst_33 {dimension_numbers = #tpu.dot_dimension_numbers<[1], [0], [0], [1], [0, 0, 1, 1], [], []>} : vector<8x128xf32>, vector<128x128xf32>, vector<8x128xf32> -> vector<8x128xf32>
    %51 = arith.addf %48, %50 : vector<8x128xf32>
    %52 = math.tanh %51 : vector<8x128xf32>
    %53 = arith.index_cast %46 : i32 to index
    %c0_34 = arith.constant 0 : index
    %54 = vector.load %arg10[%53, %c0_34] : memref<64x128xf32, #tpu.memory_space<vmem>>, vector<8x128xf32>
    tpu.vector_store %arg10[%53, %c0_34], %52 {strides = array<i32>} : memref<64x128xf32, #tpu.memory_space<vmem>>, vector<8x128xf32>,
    %c4_i32 = arith.constant 4 : i32
    %c8_i32_35 = arith.constant 8 : i32
    %55 = arith.muli %c4_i32, %c8_i32_35 : i32
    %56 = tpu.assume_multiple %55, 8 : i32
    %57 = arith.index_cast %56 : i32 to index
    %c0_36 = arith.constant 0 : index
    %58 = vector.load %arg10[%57, %c0_36] : memref<64x128xf32, #tpu.memory_space<vmem>>, vector<8x128xf32>
    %c0_37 = arith.constant 0 : index
    %c0_38 = arith.constant 0 : index
    %59 = vector.load %arg3[%c0_37, %c0_38] : memref<128x128xf32, #tpu.memory_space<vmem>>, vector<128x128xf32>
    %cst_39 = arith.constant dense<0.000000e+00> : vector<8x128xf32>
    %60 = tpu.matmul %52, %59, %cst_39 {dimension_numbers = #tpu.dot_dimension_numbers<[1], [0], [0], [1], [0, 0, 1, 1], [], []>} : vector<8x128xf32>, vector<128x128xf32>, vector<8x128xf32> -> vector<8x128xf32>
    %61 = arith.addf %58, %60 : vector<8x128xf32>
    %62 = math.tanh %61 : vector<8x128xf32>
    %63 = arith.index_cast %56 : i32 to index
    %c0_40 = arith.constant 0 : index
    %64 = vector.load %arg10[%63, %c0_40] : memref<64x128xf32, #tpu.memory_space<vmem>>, vector<8x128xf32>
    tpu.vector_store %arg10[%63, %c0_40], %62 {strides = array<i32>} : memref<64x128xf32, #tpu.memory_space<vmem>>, vector<8x128xf32>,
    %c5_i32 = arith.constant 5 : i32
    %c8_i32_41 = arith.constant 8 : i32
    %65 = arith.muli %c5_i32, %c8_i32_41 : i32
    %66 = tpu.assume_multiple %65, 8 : i32
    %67 = arith.index_cast %66 : i32 to index
    %c0_42 = arith.constant 0 : index
    %68 = vector.load %arg10[%67, %c0_42] : memref<64x128xf32, #tpu.memory_space<vmem>>, vector<8x128xf32>
    %c0_43 = arith.constant 0 : index
    %c0_44 = arith.constant 0 : index
    %69 = vector.load %arg3[%c0_43, %c0_44] : memref<128x128xf32, #tpu.memory_space<vmem>>, vector<128x128xf32>
    %cst_45 = arith.constant dense<0.000000e+00> : vector<8x128xf32>
    %70 = tpu.matmul %62, %69, %cst_45 {dimension_numbers = #tpu.dot_dimension_numbers<[1], [0], [0], [1], [0, 0, 1, 1], [], []>} : vector<8x128xf32>, vector<128x128xf32>, vector<8x128xf32> -> vector<8x128xf32>
    %71 = arith.addf %68, %70 : vector<8x128xf32>
    %72 = math.tanh %71 : vector<8x128xf32>
    %73 = arith.index_cast %66 : i32 to index
    %c0_46 = arith.constant 0 : index
    %74 = vector.load %arg10[%73, %c0_46] : memref<64x128xf32, #tpu.memory_space<vmem>>, vector<8x128xf32>
    tpu.vector_store %arg10[%73, %c0_46], %72 {strides = array<i32>} : memref<64x128xf32, #tpu.memory_space<vmem>>, vector<8x128xf32>,
    %c6_i32 = arith.constant 6 : i32
    %c8_i32_47 = arith.constant 8 : i32
    %75 = arith.muli %c6_i32, %c8_i32_47 : i32
    %76 = tpu.assume_multiple %75, 8 : i32
    %77 = arith.index_cast %76 : i32 to index
    %c0_48 = arith.constant 0 : index
    %78 = vector.load %arg10[%77, %c0_48] : memref<64x128xf32, #tpu.memory_space<vmem>>, vector<8x128xf32>
    %c0_49 = arith.constant 0 : index
    %c0_50 = arith.constant 0 : index
    %79 = vector.load %arg3[%c0_49, %c0_50] : memref<128x128xf32, #tpu.memory_space<vmem>>, vector<128x128xf32>
    %cst_51 = arith.constant dense<0.000000e+00> : vector<8x128xf32>
    %80 = tpu.matmul %72, %79, %cst_51 {dimension_numbers = #tpu.dot_dimension_numbers<[1], [0], [0], [1], [0, 0, 1, 1], [], []>} : vector<8x128xf32>, vector<128x128xf32>, vector<8x128xf32> -> vector<8x128xf32>
    %81 = arith.addf %78, %80 : vector<8x128xf32>
    %82 = math.tanh %81 : vector<8x128xf32>
    %83 = arith.index_cast %76 : i32 to index
    %c0_52 = arith.constant 0 : index
    %84 = vector.load %arg10[%83, %c0_52] : memref<64x128xf32, #tpu.memory_space<vmem>>, vector<8x128xf32>
    tpu.vector_store %arg10[%83, %c0_52], %82 {strides = array<i32>} : memref<64x128xf32, #tpu.memory_space<vmem>>, vector<8x128xf32>,
    %c7_i32 = arith.constant 7 : i32
    %c8_i32_53 = arith.constant 8 : i32
    %85 = arith.muli %c7_i32, %c8_i32_53 : i32
    %86 = tpu.assume_multiple %85, 8 : i32
    %87 = arith.index_cast %86 : i32 to index
    %c0_54 = arith.constant 0 : index
    %88 = vector.load %arg10[%87, %c0_54] : memref<64x128xf32, #tpu.memory_space<vmem>>, vector<8x128xf32>
    %c0_55 = arith.constant 0 : index
    %c0_56 = arith.constant 0 : index
    %89 = vector.load %arg3[%c0_55, %c0_56] : memref<128x128xf32, #tpu.memory_space<vmem>>, vector<128x128xf32>
    %cst_57 = arith.constant dense<0.000000e+00> : vector<8x128xf32>
    %90 = tpu.matmul %82, %89, %cst_57 {dimension_numbers = #tpu.dot_dimension_numbers<[1], [0], [0], [1], [0, 0, 1, 1], [], []>} : vector<8x128xf32>, vector<128x128xf32>, vector<8x128xf32> -> vector<8x128xf32>
    %91 = arith.addf %88, %90 : vector<8x128xf32>
    %92 = math.tanh %91 : vector<8x128xf32>
    %93 = arith.index_cast %86 : i32 to index
    %c0_58 = arith.constant 0 : index
    %94 = vector.load %arg10[%93, %c0_58] : memref<64x128xf32, #tpu.memory_space<vmem>>, vector<8x128xf32>
    tpu.vector_store %arg10[%93, %c0_58], %92 {strides = array<i32>} : memref<64x128xf32, #tpu.memory_space<vmem>>, vector<8x128xf32>,
    %c8_i32_59 = arith.constant 8 : i32
    %c0_60 = arith.constant 0 : index
    %c0_61 = arith.constant 0 : index
    %95 = vector.load %arg9[%c0_60, %c0_61] : memref<8x128xf32, #tpu.memory_space<vmem>>, vector<8x128xf32>
    tpu.vector_store %arg9[%c0_60, %c0_61], %92 {strides = array<i32>} : memref<8x128xf32, #tpu.memory_space<vmem>>, vector<8x128xf32>,
    %c0_62 = arith.constant 0 : index
    %c0_63 = arith.constant 0 : index
    %96 = vector.load %arg10[%c0_62, %c0_63] : memref<64x128xf32, #tpu.memory_space<vmem>>, vector<64x128xf32>
    %c0_64 = arith.constant 0 : index
    %c0_65 = arith.constant 0 : index
    %97 = vector.load %arg5[%c0_64, %c0_65] : memref<128x128xf32, #tpu.memory_space<vmem>>, vector<128x128xf32>
    %cst_66 = arith.constant dense<0.000000e+00> : vector<64x128xf32>
    %98 = tpu.matmul %96, %97, %cst_66 {dimension_numbers = #tpu.dot_dimension_numbers<[1], [0], [0], [1], [0, 0, 1, 1], [], []>} : vector<64x128xf32>, vector<128x128xf32>, vector<64x128xf32> -> vector<64x128xf32>
    %c0_67 = arith.constant 0 : index
    %c0_68 = arith.constant 0 : index
    %99 = vector.load %arg6[%c0_67, %c0_68] : memref<1x128xf32, #tpu.memory_space<vmem>>, vector<1x128xf32>
    %100 = vector.broadcast %99 : vector<1x128xf32> to vector<64x128xf32>
    %101 = arith.addf %98, %100 : vector<64x128xf32>
    %c0_69 = arith.constant 0 : index
    %c0_70 = arith.constant 0 : index
    %102 = vector.load %arg8[%c0_69, %c0_70] : memref<64x128xf32, #tpu.memory_space<vmem>>, vector<64x128xf32>
    tpu.vector_store %arg8[%c0_69, %c0_70], %101 {strides = array<i32>} : memref<64x128xf32, #tpu.memory_space<vmem>>, vector<64x128xf32>,
    return
  }
}

</mosaic_0001>

<llo_original>
// kernel: tpu_custom_call.1
$region0: #{tpu_custom_call.1}
  #allocation0 [shape = 'u32[]', space=smem, size = 0x4, offset = 0x4, fixed_abs, tag = 'smem constant byte address 0x4 - core index']
  #allocation1 [shape = 'u32[72,128]{1,0:T(1,128)}', space=vmem, size = 0x9000, scoped, tag = 'internal scratch']
  #allocation2 [shape = 'f32[64,128]{1,0:T(8,128)}', space=vmem, size = 0x8000, scoped, tag = 'scratch operand']
  %s0 = inlined_call_operand.vmem [shape: s32[64,1], index: 0, kind: input, shape index: {}]
  %s1 = inlined_call_operand.hbm [shape: f32[128,128], index: 1, kind: input, shape index: {}]
  %s2 = inlined_call_operand.hbm [shape: f32[128,128], index: 2, kind: input, shape index: {}]
  %s3 = inlined_call_operand.hbm [shape: f32[128,128], index: 3, kind: input, shape index: {}]
  %s4 = inlined_call_operand.vmem [shape: f32[1,128], index: 4, kind: input, shape index: {}]
  %s5 = inlined_call_operand.hbm [shape: f32[128,128], index: 5, kind: input, shape index: {}]
  %s6 = inlined_call_operand.vmem [shape: f32[1,128], index: 6, kind: input, shape index: {}]
  %s7 = inlined_call_operand.vmem [shape: f32[8,128], index: 7, kind: input, shape index: {}]
  %s8 = inlined_call_operand.hbm [shape: f32[64,128], index: 8, kind: output, shape index: {0}]
  %s9 = inlined_call_operand.hbm [shape: f32[8,128], index: 9, kind: output, shape index: {1}]
  %10 = xla_tuple %s8, %s9
  %s11 = sld [smem:[#allocation0]]
  $region66: #{tpu_custom_call.1} parent=0
    _
  %s13 = ssub.s32 1, %s11
  %s14 = scalar_select 0, %s13, %s11
  $region1: #{tpu_custom_call.1} parent=0
    #allocation3 [shape = 'u8[65536]{0}', space=vmem, size = 0x10000, scoped, tag = 'input window, operand 1, single buffered']
    #allocation4 [shape = 's32[1]{0}', space=sflag, size = 0x4, scoped, tag = 'scoped memory for tpu_custom_call.1']
    #allocation5 [shape = 's32[1]{0}', space=sflag, size = 0x4, scoped, tag = 'scoped memory for tpu_custom_call.1']
    #allocation6 [shape = 'u8[65536]{0}', space=vmem, size = 0x10000, scoped, tag = 'input window, operand 2, single buffered']
    #allocation7 [shape = 's32[1]{0}', space=sflag, size = 0x4, scoped, tag = 'scoped memory for tpu_custom_call.1']
    #allocation8 [shape = 'u8[65536]{0}', space=vmem, size = 0x10000, scoped, tag = 'input window, operand 3, single buffered']
    #allocation9 [shape = 'u8[65536]{0}', space=vmem, size = 0x10000, scoped, tag = 'input window, operand 5, single buffered']
    #allocation10 [shape = 's32[1]{0}', space=sflag, size = 0x4, scoped, tag = 'scoped memory for tpu_custom_call.1']
    #allocation11 [shape = 'u8[32768]{0}', space=vmem, size = 0x8000, scoped, tag = 'output window, operand 0, single buffered']
    #allocation12 [shape = 'u8[4096]{0}', space=vmem, size = 0x1000, scoped, tag = 'output window, operand 1, single buffered']
    #allocation13 [shape = 's32[1]{0}', space=sflag, size = 0x4, scoped, tag = 'scoped memory for tpu_custom_call.1']
    %15 = vsyncpa [#allocation4], 0
    %16 = vsyncpa [#allocation7], 0
    %17 = vsyncpa [#allocation10], 0
    %18 = vsyncpa [#allocation5], 0
    %19 = vsyncpa [#allocation13], 0
    // Predicated region
    $region2: #{tpu_custom_call.1} parent=1 // pred_check
      _
    $region3: #{tpu_custom_call.1} parent=1 // pred_check_branch
      %21 = sbr.rel (0) target = $region5
    $region4: #{tpu_custom_call.1} parent=1 // pred_region
      _
    $region5: #{tpu_custom_call.1} parent=1 // pred_fallthru
      _
    // Predicated region
    $region6: #{tpu_custom_call.1} parent=1 // pred_check
      _
    $region7: #{tpu_custom_call.1} parent=1 // pred_check_branch
      %23 = sbr.rel (0) target = $region9
    $region8: #{tpu_custom_call.1} parent=1 // pred_region
      %25 = vsyncadd [#allocation4], 0
      %s26 = sshll.u32 %s1, 4
      %s27 = int_to_ptr.hbm [resolvable:$true] %s26
      %s28 = sshll.u32 [#allocation3], 4
      %s29 = int_to_ptr.vmem [resolvable:$true] %s28
      %34 = dma.hbm_to_vmem [thread:$0]  %s27, 2048, %s29, [#allocation4], 128, 128, 8
    $region9: #{tpu_custom_call.1} parent=1 // pred_fallthru
      _
    // Predicated region
    $region10: #{tpu_custom_call.1} parent=1 // pred_check
      _
    $region11: #{tpu_custom_call.1} parent=1 // pred_check_branch
      %36 = sbr.rel (0) target = $region13
    $region12: #{tpu_custom_call.1} parent=1 // pred_region
      %38 = vsyncadd [#allocation7], 0
      %s39 = sshll.u32 %s2, 4
      %s40 = int_to_ptr.hbm [resolvable:$true] %s39
      %s41 = sshll.u32 [#allocation6], 4
      %s42 = int_to_ptr.vmem [resolvable:$true] %s41
      %47 = dma.hbm_to_vmem [thread:$0]  %s40, 2048, %s42, [#allocation7], 128, 128, 8
    $region13: #{tpu_custom_call.1} parent=1 // pred_fallthru
      _
    // Predicated region
    $region14: #{tpu_custom_call.1} parent=1 // pred_check
      _
    $region15: #{tpu_custom_call.1} parent=1 // pred_check_branch
      %49 = sbr.rel (0) target = $region17
    $region16: #{tpu_custom_call.1} parent=1 // pred_region
      %51 = vsyncadd [#allocation7], 0
      %s52 = sshll.u32 %s3, 4
      %s53 = int_to_ptr.hbm [resolvable:$true] %s52
      %s54 = sshll.u32 [#allocation8], 4
      %s55 = int_to_ptr.vmem [resolvable:$true] %s54
      %60 = dma.hbm_to_vmem [thread:$0]  %s53, 2048, %s55, [#allocation7], 128, 128, 8
    $region17: #{tpu_custom_call.1} parent=1 // pred_fallthru
      _
    // Predicated region
    $region18: #{tpu_custom_call.1} parent=1 // pred_check
      _
    $region19: #{tpu_custom_call.1} parent=1 // pred_check_branch
      %62 = sbr.rel (0) target = $region21
    $region20: #{tpu_custom_call.1} parent=1 // pred_region
      _
    $region21: #{tpu_custom_call.1} parent=1 // pred_fallthru
      _
    // Predicated region
    $region22: #{tpu_custom_call.1} parent=1 // pred_check
      _
    $region23: #{tpu_custom_call.1} parent=1 // pred_check_branch
      %64 = sbr.rel (0) target = $region25
    $region24: #{tpu_custom_call.1} parent=1 // pred_region
      %66 = vsyncadd [#allocation10], 0
      %s67 = sshll.u32 %s5, 4
      %s68 = int_to_ptr.hbm [resolvable:$true] %s67
      %s69 = sshll.u32 [#allocation9], 4
      %s70 = int_to_ptr.vmem [resolvable:$true] %s69
      %75 = dma.hbm_to_vmem [thread:$0]  %s68, 2048, %s70, [#allocation10], 128, 128, 8
    $region25: #{tpu_custom_call.1} parent=1 // pred_fallthru
      _
    // Predicated region
    $region26: #{tpu_custom_call.1} parent=1 // pred_check
      _
    $region27: #{tpu_custom_call.1} parent=1 // pred_check_branch
      %77 = sbr.rel (0) target = $region29
    $region28: #{tpu_custom_call.1} parent=1 // pred_region
      _
    $region29: #{tpu_custom_call.1} parent=1 // pred_fallthru
      _
    // Predicated region
    $region30: #{tpu_custom_call.1} parent=1 // pred_check
      _
    $region31: #{tpu_custom_call.1} parent=1 // pred_check_branch
      %79 = sbr.rel (0) target = $region33
    $region32: #{tpu_custom_call.1} parent=1 // pred_region
      _
    $region33: #{tpu_custom_call.1} parent=1 // pred_fallthru
      _
    // Predicated region
    $region34: #{tpu_custom_call.1} parent=1 // pred_check
      _
    $region35: #{tpu_custom_call.1} parent=1 // pred_check_branch
      %81 = sbr.rel (0) target = $region37
    $region36: #{tpu_custom_call.1} parent=1 // pred_region
      %83 = dma.done [#allocation4], 2048
    $region37: #{tpu_custom_call.1} parent=1 // pred_fallthru
      _
    // Predicated region
    $region38: #{tpu_custom_call.1} parent=1 // pred_check
      _
    $region39: #{tpu_custom_call.1} parent=1 // pred_check_branch
      %85 = sbr.rel (0) target = $region41
    $region40: #{tpu_custom_call.1} parent=1 // pred_region
      %87 = dma.done [#allocation7], 2048
    $region41: #{tpu_custom_call.1} parent=1 // pred_fallthru
      _
    // Predicated region
    $region42: #{tpu_custom_call.1} parent=1 // pred_check
      _
    $region43: #{tpu_custom_call.1} parent=1 // pred_check_branch
      %89 = sbr.rel (0) target = $region45
    $region44: #{tpu_custom_call.1} parent=1 // pred_region
      %91 = dma.done [#allocation7], 2048
    $region45: #{tpu_custom_call.1} parent=1 // pred_fallthru
      _
    // Predicated region
    $region46: #{tpu_custom_call.1} parent=1 // pred_check
      _
    $region47: #{tpu_custom_call.1} parent=1 // pred_check_branch
      %93 = sbr.rel (0) target = $region49
    $region48: #{tpu_custom_call.1} parent=1 // pred_region
      %95 = dma.done [#allocation10], 2048
    $region49: #{tpu_custom_call.1} parent=1 // pred_fallthru
      _
    %v96 = vlaneseq
    %v97 = vand.u32 %v96, 127
    %v98 = vld [vmem:[%s0] sm:$0xff]
    %v99 = vld [vmem:[%s0 + $0x8] sm:$0xff]
    %v100 = vld [vmem:[%s0 + $0x10] sm:$0xff]
    %v101 = vld [vmem:[%s0 + $0x18] sm:$0xff]
    %v102 = vld [vmem:[%s0 + $0x20] sm:$0xff]
    %v103 = vld [vmem:[%s0 + $0x28] sm:$0xff]
    %v104 = vld [vmem:[%s0 + $0x30] sm:$0xff]
    %v105 = vld [vmem:[%s0 + $0x38] sm:$0xff]
    %106 = vset.pattern.permute.xlu0 0
    %107 = vperm.xlu0 %106, %v98
    %v108 = vpop.permute.xlu0 %107
    %109 = vset.pattern.permute.xlu0 0
    %110 = vperm.xlu0 %109, %v99
    %v111 = vpop.permute.xlu0 %110
    %112 = vset.pattern.permute.xlu0 0
    %113 = vperm.xlu0 %112, %v100
    %v114 = vpop.permute.xlu0 %113
    %115 = vset.pattern.permute.xlu0 0
    %116 = vperm.xlu0 %115, %v101
    %v117 = vpop.permute.xlu0 %116
    %118 = vset.pattern.permute.xlu0 0
    %119 = vperm.xlu0 %118, %v102
    %v120 = vpop.permute.xlu0 %119
    %121 = vset.pattern.permute.xlu0 0
    %122 = vperm.xlu0 %121, %v103
    %v123 = vpop.permute.xlu0 %122
    %124 = vset.pattern.permute.xlu0 0
    %125 = vperm.xlu0 %124, %v104
    %v126 = vpop.permute.xlu0 %125
    %127 = vset.pattern.permute.xlu0 0
    %128 = vperm.xlu0 %127, %v105
    %v129 = vpop.permute.xlu0 %128
    %vm130 = vcmp.eq.s32.totalorder %v108, %v97
    %vm131 = vcmp.eq.s32.totalorder %v111, %v97
    %vm132 = vcmp.eq.s32.totalorder %v114, %v97
    %vm133 = vcmp.eq.s32.totalorder %v117, %v97
    %vm134 = vcmp.eq.s32.totalorder %v120, %v97
    %vm135 = vcmp.eq.s32.totalorder %v123, %v97
    %vm136 = vcmp.eq.s32.totalorder %v126, %v97
    %vm137 = vcmp.eq.s32.totalorder %v129, %v97
    %v138 = vsel %vm130, 1, 0
    %v139 = vsel %vm131, 1, 0
    %v140 = vsel %vm132, 1, 0
    %v141 = vsel %vm133, 1, 0
    %v142 = vsel %vm134, 1, 0
    %v143 = vsel %vm135, 1, 0
    %v144 = vsel %vm136, 1, 0
    %v145 = vsel %vm137, 1, 0
    %v146 = vcvt.s32.f32 %v138
    %v147 = vcvt.s32.f32 %v139
    %v148 = vcvt.s32.f32 %v140
    %v149 = vcvt.s32.f32 %v141
    %v150 = vcvt.s32.f32 %v142
    %v151 = vcvt.s32.f32 %v143
    %v152 = vcvt.s32.f32 %v144
    %v153 = vcvt.s32.f32 %v145
    %v154 = vld [vmem:[#allocation3] sm:$0xff]
    %v155 = vld [vmem:[#allocation3 + $0x8] sm:$0xff]
    %v156 = vld [vmem:[#allocation3 + $0x10] sm:$0xff]
    %v157 = vld [vmem:[#allocation3 + $0x18] sm:$0xff]
    %v158 = vld [vmem:[#allocation3 + $0x20] sm:$0xff]
    %v159 = vld [vmem:[#allocation3 + $0x28] sm:$0xff]
    %v160 = vld [vmem:[#allocation3 + $0x30] sm:$0xff]
    %v161 = vld [vmem:[#allocation3 + $0x38] sm:$0xff]
    %v162 = vld [vmem:[#allocation3 + $0x40] sm:$0xff]
    %v163 = vld [vmem:[#allocation3 + $0x48] sm:$0xff]
    %v164 = vld [vmem:[#allocation3 + $0x50] sm:$0xff]
    %v165 = vld [vmem:[#allocation3 + $0x58] sm:$0xff]
    %v166 = vld [vmem:[#allocation3 + $0x60] sm:$0xff]
    %v167 = vld [vmem:[#allocation3 + $0x68] sm:$0xff]
    %v168 = vld [vmem:[#allocation3 + $0x70] sm:$0xff]
    %v169 = vld [vmem:[#allocation3 + $0x78] sm:$0xff]
    %170 = vmatpush.msra.mxu0 %v169
    %171 = vmatpush.msra.mxu0 %v168
    %172 = vmatpush.msra.mxu0 %v167
    %173 = vmatpush.msra.mxu0 %v166
    %174 = vmatpush.msra.mxu0 %v165
    %175 = vmatpush.msra.mxu0 %v164
    %176 = vmatpush.msra.mxu0 %v163
    %177 = vmatpush.msra.mxu0 %v162
    %178 = vmatpush.msra.mxu0 %v161
    %179 = vmatpush.msra.mxu0 %v160
    %180 = vmatpush.msra.mxu0 %v159
    %181 = vmatpush.msra.mxu0 %v158
    %182 = vmatpush.msra.mxu0 %v157
    %183 = vmatpush.msra.mxu0 %v156
    %184 = vmatpush.msra.mxu0 %v155
    %185 = vmatpush.msra.mxu0 %v154
    %186 = vmatmul.f32.gmra.mxu0 %v146
    %v187 = vpop.f32.mrf.mxu0
    %v188 = vadd.f32 0.0, %v187
    %189 = vmatmul.f32.gmra.mxu0 %v147
    %v190 = vpop.f32.mrf.mxu0
    %v191 = vadd.f32 0.0, %v190
    %192 = vmatmul.f32.gmra.mxu0 %v148
    %v193 = vpop.f32.mrf.mxu0
    %v194 = vadd.f32 0.0, %v193
    %195 = vmatmul.f32.gmra.mxu0 %v149
    %v196 = vpop.f32.mrf.mxu0
    %v197 = vadd.f32 0.0, %v196
    %198 = vmatmul.f32.gmra.mxu0 %v150
    %v199 = vpop.f32.mrf.mxu0
    %v200 = vadd.f32 0.0, %v199
    %201 = vmatmul.f32.gmra.mxu0 %v151
    %v202 = vpop.f32.mrf.mxu0
    %v203 = vadd.f32 0.0, %v202
    %204 = vmatmul.f32.gmra.mxu0 %v152
    %v205 = vpop.f32.mrf.mxu0
    %v206 = vadd.f32 0.0, %v205
    %207 = vmatmul.f32.gmra.mxu0 %v153
    %v208 = vpop.f32.mrf.mxu0
    %v209 = vadd.f32 0.0, %v208
    %210 = vdwg.mxu0
    %v211 = vld [vmem:[#allocation6] sm:$0xff]
    %v212 = vld [vmem:[#allocation6 + $0x8] sm:$0xff]
    %v213 = vld [vmem:[#allocation6 + $0x10] sm:$0xff]
    %v214 = vld [vmem:[#allocation6 + $0x18] sm:$0xff]
    %v215 = vld [vmem:[#allocation6 + $0x20] sm:$0xff]
    %v216 = vld [vmem:[#allocation6 + $0x28] sm:$0xff]
    %v217 = vld [vmem:[#allocation6 + $0x30] sm:$0xff]
    %v218 = vld [vmem:[#allocation6 + $0x38] sm:$0xff]
    %v219 = vld [vmem:[#allocation6 + $0x40] sm:$0xff]
    %v220 = vld [vmem:[#allocation6 + $0x48] sm:$0xff]
    %v221 = vld [vmem:[#allocation6 + $0x50] sm:$0xff]
    %v222 = vld [vmem:[#allocation6 + $0x58] sm:$0xff]
    %v223 = vld [vmem:[#allocation6 + $0x60] sm:$0xff]
    %v224 = vld [vmem:[#allocation6 + $0x68] sm:$0xff]
    %v225 = vld [vmem:[#allocation6 + $0x70] sm:$0xff]
    %v226 = vld [vmem:[#allocation6 + $0x78] sm:$0xff]
    %v227 = vld [vmem:[%s4] sm:$0x1]
    %v229 = vperm.slane %v227, 0
    %231 = vmatpush.msra.mxu0 %v226
    %232 = vmatpush.msra.mxu0 %v225
    %233 = vmatpush.msra.mxu0 %v224
    %234 = vmatpush.msra.mxu0 %v223
    %235 = vmatpush.msra.mxu0 %v222
    %236 = vmatpush.msra.mxu0 %v221
    %237 = vmatpush.msra.mxu0 %v220
    %238 = vmatpush.msra.mxu0 %v219
    %239 = vmatpush.msra.mxu0 %v218
    %240 = vmatpush.msra.mxu0 %v217
    %241 = vmatpush.msra.mxu0 %v216
    %242 = vmatpush.msra.mxu0 %v215
    %243 = vmatpush.msra.mxu0 %v214
    %244 = vmatpush.msra.mxu0 %v213
    %245 = vmatpush.msra.mxu0 %v212
    %246 = vmatpush.msra.mxu0 %v211
    %247 = vmatmul.f32.gmra.mxu0 %v188
    %v248 = vpop.f32.mrf.mxu0
    %v249 = vadd.f32 %v229, %v248
    %250 = vmatmul.f32.gmra.mxu0 %v191
    %v251 = vpop.f32.mrf.mxu0
    %v252 = vadd.f32 %v229, %v251
    %253 = vmatmul.f32.gmra.mxu0 %v194
    %v254 = vpop.f32.mrf.mxu0
    %v255 = vadd.f32 %v229, %v254
    %256 = vmatmul.f32.gmra.mxu0 %v197
    %v257 = vpop.f32.mrf.mxu0
    %v258 = vadd.f32 %v229, %v257
    %259 = vmatmul.f32.gmra.mxu0 %v200
    %v260 = vpop.f32.mrf.mxu0
    %v261 = vadd.f32 %v229, %v260
    %262 = vmatmul.f32.gmra.mxu0 %v203
    %v263 = vpop.f32.mrf.mxu0
    %v264 = vadd.f32 %v229, %v263
    %265 = vmatmul.f32.gmra.mxu0 %v206
    %v266 = vpop.f32.mrf.mxu0
    %v267 = vadd.f32 %v229, %v266
    %268 = vmatmul.f32.gmra.mxu0 %v209
    %v269 = vpop.f32.mrf.mxu0
    %v270 = vadd.f32 %v229, %v269
    %271 = vdwg.mxu0
    %272 = vst [vmem:[#allocation2] sm:$0xff] %v249
    %273 = vst [vmem:[#allocation2 + $0x8] sm:$0xff] %v252
    %274 = vst [vmem:[#allocation2 + $0x10] sm:$0xff] %v255
    %275 = vst [vmem:[#allocation2 + $0x18] sm:$0xff] %v258
    %276 = vst [vmem:[#allocation2 + $0x20] sm:$0xff] %v261
    %277 = vst [vmem:[#allocation2 + $0x28] sm:$0xff] %v264
    %278 = vst [vmem:[#allocation2 + $0x30] sm:$0xff] %v267
    %279 = vst [vmem:[#allocation2 + $0x38] sm:$0xff] %v270
    %v280 = vld [vmem:[%s7] sm:$0xff]
    %v281 = vld [vmem:[#allocation2] sm:$0xff]
    %v282 = vld [vmem:[#allocation8] sm:$0xff]
    %v283 = vld [vmem:[#allocation8 + $0x8] sm:$0xff]
    %v284 = vld [vmem:[#allocation8 + $0x10] sm:$0xff]
    %v285 = vld [vmem:[#allocation8 + $0x18] sm:$0xff]
    %v286 = vld [vmem:[#allocation8 + $0x20] sm:$0xff]
    %v287 = vld [vmem:[#allocation8 + $0x28] sm:$0xff]
    %v288 = vld [vmem:[#allocation8 + $0x30] sm:$0xff]
    %v289 = vld [vmem:[#allocation8 + $0x38] sm:$0xff]
    %v290 = vld [vmem:[#allocation8 + $0x40] sm:$0xff]
    %v291 = vld [vmem:[#allocation8 + $0x48] sm:$0xff]
    %v292 = vld [vmem:[#allocation8 + $0x50] sm:$0xff]
    %v293 = vld [vmem:[#allocation8 + $0x58] sm:$0xff]
    %v294 = vld [vmem:[#allocation8 + $0x60] sm:$0xff]
    %v295 = vld [vmem:[#allocation8 + $0x68] sm:$0xff]
    %v296 = vld [vmem:[#allocation8 + $0x70] sm:$0xff]
    %v297 = vld [vmem:[#allocation8 + $0x78] sm:$0xff]
    %298 = vmatpush.msra.mxu0 %v297
    %299 = vmatpush.msra.mxu0 %v296
    %300 = vmatpush.msra.mxu0 %v295
    %301 = vmatpush.msra.mxu0 %v294
    %302 = vmatpush.msra.mxu0 %v293
    %303 = vmatpush.msra.mxu0 %v292
    %304 = vmatpush.msra.mxu0 %v291
    %305 = vmatpush.msra.mxu0 %v290
    %306 = vmatpush.msra.mxu0 %v289
    %307 = vmatpush.msra.mxu0 %v288
    %308 = vmatpush.msra.mxu0 %v287
    %309 = vmatpush.msra.mxu0 %v286
    %310 = vmatpush.msra.mxu0 %v285
    %311 = vmatpush.msra.mxu0 %v284
    %312 = vmatpush.msra.mxu0 %v283
    %313 = vmatpush.msra.mxu0 %v282
    %314 = vmatmul.f32.gmra.mxu0 %v280
    %v315 = vpop.f32.mrf.mxu0
    %v316 = vadd.f32 0.0, %v315
    %317 = vdwg.mxu0
    %v318 = vadd.f32 %v281, %v316
    %v319 = vtanh.pop %v318
    %320 = vst [vmem:[#allocation2] sm:$0xff] %v319
    %s321 = scalar_lea.vmem [#allocation2], 8
    %v322 = vld [vmem:[%s321] sm:$0xff]
    %v323 = vld [vmem:[#allocation8] sm:$0xff]
    %v324 = vld [vmem:[#allocation8 + $0x8] sm:$0xff]
    %v325 = vld [vmem:[#allocation8 + $0x10] sm:$0xff]
    %v326 = vld [vmem:[#allocation8 + $0x18] sm:$0xff]
    %v327 = vld [vmem:[#allocation8 + $0x20] sm:$0xff]
    %v328 = vld [vmem:[#allocation8 + $0x28] sm:$0xff]
    %v329 = vld [vmem:[#allocation8 + $0x30] sm:$0xff]
    %v330 = vld [vmem:[#allocation8 + $0x38] sm:$0xff]
    %v331 = vld [vmem:[#allocation8 + $0x40] sm:$0xff]
    %v332 = vld [vmem:[#allocation8 + $0x48] sm:$0xff]
    %v333 = vld [vmem:[#allocation8 + $0x50] sm:$0xff]
    %v334 = vld [vmem:[#allocation8 + $0x58] sm:$0xff]
    %v335 = vld [vmem:[#allocation8 + $0x60] sm:$0xff]
    %v336 = vld [vmem:[#allocation8 + $0x68] sm:$0xff]
    %v337 = vld [vmem:[#allocation8 + $0x70] sm:$0xff]
    %v338 = vld [vmem:[#allocation8 + $0x78] sm:$0xff]
    %339 = vmatpush.msra.mxu0 %v338
    %340 = vmatpush.msra.mxu0 %v337
    %341 = vmatpush.msra.mxu0 %v336
    %342 = vmatpush.msra.mxu0 %v335
    %343 = vmatpush.msra.mxu0 %v334
    %344 = vmatpush.msra.mxu0 %v333
    %345 = vmatpush.msra.mxu0 %v332
    %346 = vmatpush.msra.mxu0 %v331
    %347 = vmatpush.msra.mxu0 %v330
    %348 = vmatpush.msra.mxu0 %v329
    %349 = vmatpush.msra.mxu0 %v328
    %350 = vmatpush.msra.mxu0 %v327
    %351 = vmatpush.msra.mxu0 %v326
    %352 = vmatpush.msra.mxu0 %v325
    %353 = vmatpush.msra.mxu0 %v324
    %354 = vmatpush.msra.mxu0 %v323
    %355 = vmatmul.f32.gmra.mxu0 %v319
    %v356 = vpop.f32.mrf.mxu0
    %v357 = vadd.f32 0.0, %v356
    %358 = vdwg.mxu0
    %v359 = vadd.f32 %v322, %v357
    %v360 = vtanh.pop %v359
    %361 = vst [vmem:[%s321] sm:$0xff] %v360
    %s362 = scalar_lea.vmem [#allocation2], 16
    %v363 = vld [vmem:[%s362] sm:$0xff]
    %v364 = vld [vmem:[#allocation8] sm:$0xff]
    %v365 = vld [vmem:[#allocation8 + $0x8] sm:$0xff]
    %v366 = vld [vmem:[#allocation8 + $0x10] sm:$0xff]
    %v367 = vld [vmem:[#allocation8 + $0x18] sm:$0xff]
    %v368 = vld [vmem:[#allocation8 + $0x20] sm:$0xff]
    %v369 = vld [vmem:[#allocation8 + $0x28] sm:$0xff]
    %v370 = vld [vmem:[#allocation8 + $0x30] sm:$0xff]
    %v371 = vld [vmem:[#allocation8 + $0x38] sm:$0xff]
    %v372 = vld [vmem:[#allocation8 + $0x40] sm:$0xff]
    %v373 = vld [vmem:[#allocation8 + $0x48] sm:$0xff]
    %v374 = vld [vmem:[#allocation8 + $0x50] sm:$0xff]
    %v375 = vld [vmem:[#allocation8 + $0x58] sm:$0xff]
    %v376 = vld [vmem:[#allocation8 + $0x60] sm:$0xff]
    %v377 = vld [vmem:[#allocation8 + $0x68] sm:$0xff]
    %v378 = vld [vmem:[#allocation8 + $0x70] sm:$0xff]
    %v379 = vld [vmem:[#allocation8 + $0x78] sm:$0xff]
    %380 = vmatpush.msra.mxu0 %v379
    %381 = vmatpush.msra.mxu0 %v378
    %382 = vmatpush.msra.mxu0 %v377
    %383 = vmatpush.msra.mxu0 %v376
    %384 = vmatpush.msra.mxu0 %v375
    %385 = vmatpush.msra.mxu0 %v374
    %386 = vmatpush.msra.mxu0 %v373
    %387 = vmatpush.msra.mxu0 %v372
    %388 = vmatpush.msra.mxu0 %v371
    %389 = vmatpush.msra.mxu0 %v370
    %390 = vmatpush.msra.mxu0 %v369
    %391 = vmatpush.msra.mxu0 %v368
    %392 = vmatpush.msra.mxu0 %v367
    %393 = vmatpush.msra.mxu0 %v366
    %394 = vmatpush.msra.mxu0 %v365
    %395 = vmatpush.msra.mxu0 %v364
    %396 = vmatmul.f32.gmra.mxu0 %v360
    %v397 = vpop.f32.mrf.mxu0
    %v398 = vadd.f32 0.0, %v397
    %399 = vdwg.mxu0
    %v400 = vadd.f32 %v363, %v398
    %v401 = vtanh.pop %v400
    %402 = vst [vmem:[%s362] sm:$0xff] %v401
    %s403 = scalar_lea.vmem [#allocation2], 24
    %v404 = vld [vmem:[%s403] sm:$0xff]
    %v405 = vld [vmem:[#allocation8] sm:$0xff]
    %v406 = vld [vmem:[#allocation8 + $0x8] sm:$0xff]
    %v407 = vld [vmem:[#allocation8 + $0x10] sm:$0xff]
    %v408 = vld [vmem:[#allocation8 + $0x18] sm:$0xff]
    %v409 = vld [vmem:[#allocation8 + $0x20] sm:$0xff]
    %v410 = vld [vmem:[#allocation8 + $0x28] sm:$0xff]
    %v411 = vld [vmem:[#allocation8 + $0x30] sm:$0xff]
    %v412 = vld [vmem:[#allocation8 + $0x38] sm:$0xff]
    %v413 = vld [vmem:[#allocation8 + $0x40] sm:$0xff]
    %v414 = vld [vmem:[#allocation8 + $0x48] sm:$0xff]
    %v415 = vld [vmem:[#allocation8 + $0x50] sm:$0xff]
    %v416 = vld [vmem:[#allocation8 + $0x58] sm:$0xff]
    %v417 = vld [vmem:[#allocation8 + $0x60] sm:$0xff]
    %v418 = vld [vmem:[#allocation8 + $0x68] sm:$0xff]
    %v419 = vld [vmem:[#allocation8 + $0x70] sm:$0xff]
    %v420 = vld [vmem:[#allocation8 + $0x78] sm:$0xff]
    %421 = vmatpush.msra.mxu0 %v420
    %422 = vmatpush.msra.mxu0 %v419
    %423 = vmatpush.msra.mxu0 %v418
    %424 = vmatpush.msra.mxu0 %v417
    %425 = vmatpush.msra.mxu0 %v416
    %426 = vmatpush.msra.mxu0 %v415
    %427 = vmatpush.msra.mxu0 %v414
    %428 = vmatpush.msra.mxu0 %v413
    %429 = vmatpush.msra.mxu0 %v412
    %430 = vmatpush.msra.mxu0 %v411
    %431 = vmatpush.msra.mxu0 %v410
    %432 = vmatpush.msra.mxu0 %v409
    %433 = vmatpush.msra.mxu0 %v408
    %434 = vmatpush.msra.mxu0 %v407
    %435 = vmatpush.msra.mxu0 %v406
    %436 = vmatpush.msra.mxu0 %v405
    %437 = vmatmul.f32.gmra.mxu0 %v401
    %v438 = vpop.f32.mrf.mxu0
    %v439 = vadd.f32 0.0, %v438
    %440 = vdwg.mxu0
    %v441 = vadd.f32 %v404, %v439
    %v442 = vtanh.pop %v441
    %443 = vst [vmem:[%s403] sm:$0xff] %v442
    %s444 = scalar_lea.vmem [#allocation2], 32
    %v445 = vld [vmem:[%s444] sm:$0xff]
    %v446 = vld [vmem:[#allocation8] sm:$0xff]
    %v447 = vld [vmem:[#allocation8 + $0x8] sm:$0xff]
    %v448 = vld [vmem:[#allocation8 + $0x10] sm:$0xff]
    %v449 = vld [vmem:[#allocation8 + $0x18] sm:$0xff]
    %v450 = vld [vmem:[#allocation8 + $0x20] sm:$0xff]
    %v451 = vld [vmem:[#allocation8 + $0x28] sm:$0xff]
    %v452 = vld [vmem:[#allocation8 + $0x30] sm:$0xff]
    %v453 = vld [vmem:[#allocation8 + $0x38] sm:$0xff]
    %v454 = vld [vmem:[#allocation8 + $0x40] sm:$0xff]
    %v455 = vld [vmem:[#allocation8 + $0x48] sm:$0xff]
    %v456 = vld [vmem:[#allocation8 + $0x50] sm:$0xff]
    %v457 = vld [vmem:[#allocation8 + $0x58] sm:$0xff]
    %v458 = vld [vmem:[#allocation8 + $0x60] sm:$0xff]
    %v459 = vld [vmem:[#allocation8 + $0x68] sm:$0xff]
    %v460 = vld [vmem:[#allocation8 + $0x70] sm:$0xff]
    %v461 = vld [vmem:[#allocation8 + $0x78] sm:$0xff]
    %462 = vmatpush.msra.mxu0 %v461
    %463 = vmatpush.msra.mxu0 %v460
    %464 = vmatpush.msra.mxu0 %v459
    %465 = vmatpush.msra.mxu0 %v458
    %466 = vmatpush.msra.mxu0 %v457
    %467 = vmatpush.msra.mxu0 %v456
    %468 = vmatpush.msra.mxu0 %v455
    %469 = vmatpush.msra.mxu0 %v454
    %470 = vmatpush.msra.mxu0 %v453
    %471 = vmatpush.msra.mxu0 %v452
    %472 = vmatpush.msra.mxu0 %v451
    %473 = vmatpush.msra.mxu0 %v450
    %474 = vmatpush.msra.mxu0 %v449
    %475 = vmatpush.msra.mxu0 %v448
    %476 = vmatpush.msra.mxu0 %v447
    %477 = vmatpush.msra.mxu0 %v446
    %478 = vmatmul.f32.gmra.mxu0 %v442
    %v479 = vpop.f32.mrf.mxu0
    %v480 = vadd.f32 0.0, %v479
    %481 = vdwg.mxu0
    %v482 = vadd.f32 %v445, %v480
    %v483 = vtanh.pop %v482
    %484 = vst [vmem:[%s444] sm:$0xff] %v483
    %s485 = scalar_lea.vmem [#allocation2], 40
    %v486 = vld [vmem:[%s485] sm:$0xff]
    %v487 = vld [vmem:[#allocation8] sm:$0xff]
    %v488 = vld [vmem:[#allocation8 + $0x8] sm:$0xff]
    %v489 = vld [vmem:[#allocation8 + $0x10] sm:$0xff]
    %v490 = vld [vmem:[#allocation8 + $0x18] sm:$0xff]
    %v491 = vld [vmem:[#allocation8 + $0x20] sm:$0xff]
    %v492 = vld [vmem:[#allocation8 + $0x28] sm:$0xff]
    %v493 = vld [vmem:[#allocation8 + $0x30] sm:$0xff]
    %v494 = vld [vmem:[#allocation8 + $0x38] sm:$0xff]
    %v495 = vld [vmem:[#allocation8 + $0x40] sm:$0xff]
    %v496 = vld [vmem:[#allocation8 + $0x48] sm:$0xff]
    %v497 = vld [vmem:[#allocation8 + $0x50] sm:$0xff]
    %v498 = vld [vmem:[#allocation8 + $0x58] sm:$0xff]
    %v499 = vld [vmem:[#allocation8 + $0x60] sm:$0xff]
    %v500 = vld [vmem:[#allocation8 + $0x68] sm:$0xff]
    %v501 = vld [vmem:[#allocation8 + $0x70] sm:$0xff]
    %v502 = vld [vmem:[#allocation8 + $0x78] sm:$0xff]
    %503 = vmatpush.msra.mxu0 %v502
    %504 = vmatpush.msra.mxu0 %v501
    %505 = vmatpush.msra.mxu0 %v500
    %506 = vmatpush.msra.mxu0 %v499
    %507 = vmatpush.msra.mxu0 %v498
    %508 = vmatpush.msra.mxu0 %v497
    %509 = vmatpush.msra.mxu0 %v496
    %510 = vmatpush.msra.mxu0 %v495
    %511 = vmatpush.msra.mxu0 %v494
    %512 = vmatpush.msra.mxu0 %v493
    %513 = vmatpush.msra.mxu0 %v492
    %514 = vmatpush.msra.mxu0 %v491
    %515 = vmatpush.msra.mxu0 %v490
    %516 = vmatpush.msra.mxu0 %v489
    %517 = vmatpush.msra.mxu0 %v488
    %518 = vmatpush.msra.mxu0 %v487
    %519 = vmatmul.f32.gmra.mxu0 %v483
    %v520 = vpop.f32.mrf.mxu0
    %v521 = vadd.f32 0.0, %v520
    %522 = vdwg.mxu0
    %v523 = vadd.f32 %v486, %v521
    %v524 = vtanh.pop %v523
    %525 = vst [vmem:[%s485] sm:$0xff] %v524
    %s526 = scalar_lea.vmem [#allocation2], 48
    %v527 = vld [vmem:[%s526] sm:$0xff]
    %v528 = vld [vmem:[#allocation8] sm:$0xff]
    %v529 = vld [vmem:[#allocation8 + $0x8] sm:$0xff]
    %v530 = vld [vmem:[#allocation8 + $0x10] sm:$0xff]
    %v531 = vld [vmem:[#allocation8 + $0x18] sm:$0xff]
    %v532 = vld [vmem:[#allocation8 + $0x20] sm:$0xff]
    %v533 = vld [vmem:[#allocation8 + $0x28] sm:$0xff]
    %v534 = vld [vmem:[#allocation8 + $0x30] sm:$0xff]
    %v535 = vld [vmem:[#allocation8 + $0x38] sm:$0xff]
    %v536 = vld [vmem:[#allocation8 + $0x40] sm:$0xff]
    %v537 = vld [vmem:[#allocation8 + $0x48] sm:$0xff]
    %v538 = vld [vmem:[#allocation8 + $0x50] sm:$0xff]
    %v539 = vld [vmem:[#allocation8 + $0x58] sm:$0xff]
    %v540 = vld [vmem:[#allocation8 + $0x60] sm:$0xff]
    %v541 = vld [vmem:[#allocation8 + $0x68] sm:$0xff]
    %v542 = vld [vmem:[#allocation8 + $0x70] sm:$0xff]
    %v543 = vld [vmem:[#allocation8 + $0x78] sm:$0xff]
    %544 = vmatpush.msra.mxu0 %v543
    %545 = vmatpush.msra.mxu0 %v542
    %546 = vmatpush.msra.mxu0 %v541
    %547 = vmatpush.msra.mxu0 %v540
    %548 = vmatpush.msra.mxu0 %v539
    %549 = vmatpush.msra.mxu0 %v538
    %550 = vmatpush.msra.mxu0 %v537
    %551 = vmatpush.msra.mxu0 %v536
    %552 = vmatpush.msra.mxu0 %v535
    %553 = vmatpush.msra.mxu0 %v534
    %554 = vmatpush.msra.mxu0 %v533
    %555 = vmatpush.msra.mxu0 %v532
    %556 = vmatpush.msra.mxu0 %v531
    %557 = vmatpush.msra.mxu0 %v530
    %558 = vmatpush.msra.mxu0 %v529
    %559 = vmatpush.msra.mxu0 %v528
    %560 = vmatmul.f32.gmra.mxu0 %v524
    %v561 = vpop.f32.mrf.mxu0
    %v562 = vadd.f32 0.0, %v561
    %563 = vdwg.mxu0
    %v564 = vadd.f32 %v527, %v562
    %v565 = vtanh.pop %v564
    %566 = vst [vmem:[%s526] sm:$0xff] %v565
    %s567 = scalar_lea.vmem [#allocation2], 56
    %v568 = vld [vmem:[%s567] sm:$0xff]
    %v569 = vld [vmem:[#allocation8] sm:$0xff]
    %v570 = vld [vmem:[#allocation8 + $0x8] sm:$0xff]
    %v571 = vld [vmem:[#allocation8 + $0x10] sm:$0xff]
    %v572 = vld [vmem:[#allocation8 + $0x18] sm:$0xff]
    %v573 = vld [vmem:[#allocation8 + $0x20] sm:$0xff]
    %v574 = vld [vmem:[#allocation8 + $0x28] sm:$0xff]
    %v575 = vld [vmem:[#allocation8 + $0x30] sm:$0xff]
    %v576 = vld [vmem:[#allocation8 + $0x38] sm:$0xff]
    %v577 = vld [vmem:[#allocation8 + $0x40] sm:$0xff]
    %v578 = vld [vmem:[#allocation8 + $0x48] sm:$0xff]
    %v579 = vld [vmem:[#allocation8 + $0x50] sm:$0xff]
    %v580 = vld [vmem:[#allocation8 + $0x58] sm:$0xff]
    %v581 = vld [vmem:[#allocation8 + $0x60] sm:$0xff]
    %v582 = vld [vmem:[#allocation8 + $0x68] sm:$0xff]
    %v583 = vld [vmem:[#allocation8 + $0x70] sm:$0xff]
    %v584 = vld [vmem:[#allocation8 + $0x78] sm:$0xff]
    %585 = vmatpush.msra.mxu0 %v584
    %586 = vmatpush.msra.mxu0 %v583
    %587 = vmatpush.msra.mxu0 %v582
    %588 = vmatpush.msra.mxu0 %v581
    %589 = vmatpush.msra.mxu0 %v580
    %590 = vmatpush.msra.mxu0 %v579
    %591 = vmatpush.msra.mxu0 %v578
    %592 = vmatpush.msra.mxu0 %v577
    %593 = vmatpush.msra.mxu0 %v576
    %594 = vmatpush.msra.mxu0 %v575
    %595 = vmatpush.msra.mxu0 %v574
    %596 = vmatpush.msra.mxu0 %v573
    %597 = vmatpush.msra.mxu0 %v572
    %598 = vmatpush.msra.mxu0 %v571
    %599 = vmatpush.msra.mxu0 %v570
    %600 = vmatpush.msra.mxu0 %v569
    %601 = vmatmul.f32.gmra.mxu0 %v565
    %v602 = vpop.f32.mrf.mxu0
    %v603 = vadd.f32 0.0, %v602
    %604 = vdwg.mxu0
    %v605 = vadd.f32 %v568, %v603
    %v606 = vtanh.pop %v605
    %607 = vst [vmem:[%s567] sm:$0xff] %v606
    %608 = vst [vmem:[#allocation12] sm:$0xff] %v606
    %v609 = vld [vmem:[#allocation2] sm:$0xff]
    %v610 = vld [vmem:[#allocation2 + $0x8] sm:$0xff]
    %v611 = vld [vmem:[#allocation2 + $0x10] sm:$0xff]
    %v612 = vld [vmem:[#allocation2 + $0x18] sm:$0xff]
    %v613 = vld [vmem:[#allocation2 + $0x20] sm:$0xff]
    %v614 = vld [vmem:[#allocation2 + $0x28] sm:$0xff]
    %v615 = vld [vmem:[#allocation2 + $0x30] sm:$0xff]
    %v616 = vld [vmem:[#allocation2 + $0x38] sm:$0xff]
    %v617 = vld [vmem:[#allocation9] sm:$0xff]
    %v618 = vld [vmem:[#allocation9 + $0x8] sm:$0xff]
    %v619 = vld [vmem:[#allocation9 + $0x10] sm:$0xff]
    %v620 = vld [vmem:[#allocation9 + $0x18] sm:$0xff]
    %v621 = vld [vmem:[#allocation9 + $0x20] sm:$0xff]
    %v622 = vld [vmem:[#allocation9 + $0x28] sm:$0xff]
    %v623 = vld [vmem:[#allocation9 + $0x30] sm:$0xff]
    %v624 = vld [vmem:[#allocation9 + $0x38] sm:$0xff]
    %v625 = vld [vmem:[#allocation9 + $0x40] sm:$0xff]
    %v626 = vld [vmem:[#allocation9 + $0x48] sm:$0xff]
    %v627 = vld [vmem:[#allocation9 + $0x50] sm:$0xff]
    %v628 = vld [vmem:[#allocation9 + $0x58] sm:$0xff]
    %v629 = vld [vmem:[#allocation9 + $0x60] sm:$0xff]
    %v630 = vld [vmem:[#allocation9 + $0x68] sm:$0xff]
    %v631 = vld [vmem:[#allocation9 + $0x70] sm:$0xff]
    %v632 = vld [vmem:[#allocation9 + $0x78] sm:$0xff]
    %v633 = vld [vmem:[%s6] sm:$0x1]
    %v635 = vperm.slane %v633, 0
    %637 = vmatpush.msra.mxu0 %v632
    %638 = vmatpush.msra.mxu0 %v631
    %639 = vmatpush.msra.mxu0 %v630
    %640 = vmatpush.msra.mxu0 %v629
    %641 = vmatpush.msra.mxu0 %v628
    %642 = vmatpush.msra.mxu0 %v627
    %643 = vmatpush.msra.mxu0 %v626
    %644 = vmatpush.msra.mxu0 %v625
    %645 = vmatpush.msra.mxu0 %v624
    %646 = vmatpush.msra.mxu0 %v623
    %647 = vmatpush.msra.mxu0 %v622
    %648 = vmatpush.msra.mxu0 %v621
    %649 = vmatpush.msra.mxu0 %v620
    %650 = vmatpush.msra.mxu0 %v619
    %651 = vmatpush.msra.mxu0 %v618
    %652 = vmatpush.msra.mxu0 %v617
    %653 = vmatmul.f32.gmra.mxu0 %v609
    %v654 = vpop.f32.mrf.mxu0
    %v655 = vadd.f32 %v635, %v654
    %656 = vmatmul.f32.gmra.mxu0 %v610
    %v657 = vpop.f32.mrf.mxu0
    %v658 = vadd.f32 %v635, %v657
    %659 = vmatmul.f32.gmra.mxu0 %v611
    %v660 = vpop.f32.mrf.mxu0
    %v661 = vadd.f32 %v635, %v660
    %662 = vmatmul.f32.gmra.mxu0 %v612
    %v663 = vpop.f32.mrf.mxu0
    %v664 = vadd.f32 %v635, %v663
    %665 = vmatmul.f32.gmra.mxu0 %v613
    %v666 = vpop.f32.mrf.mxu0
    %v667 = vadd.f32 %v635, %v666
    %668 = vmatmul.f32.gmra.mxu0 %v614
    %v669 = vpop.f32.mrf.mxu0
    %v670 = vadd.f32 %v635, %v669
    %671 = vmatmul.f32.gmra.mxu0 %v615
    %v672 = vpop.f32.mrf.mxu0
    %v673 = vadd.f32 %v635, %v672
    %674 = vmatmul.f32.gmra.mxu0 %v616
    %v675 = vpop.f32.mrf.mxu0
    %v676 = vadd.f32 %v635, %v675
    %677 = vdwg.mxu0
    %678 = vst [vmem:[#allocation11] sm:$0xff] %v655
    %679 = vst [vmem:[#allocation11 + $0x8] sm:$0xff] %v658
    %680 = vst [vmem:[#allocation11 + $0x10] sm:$0xff] %v661
    %681 = vst [vmem:[#allocation11 + $0x18] sm:$0xff] %v664
    %682 = vst [vmem:[#allocation11 + $0x20] sm:$0xff] %v667
    %683 = vst [vmem:[#allocation11 + $0x28] sm:$0xff] %v670
    %684 = vst [vmem:[#allocation11 + $0x30] sm:$0xff] %v673
    %685 = vst [vmem:[#allocation11 + $0x38] sm:$0xff] %v676
    // Predicated region
    $region50: #{tpu_custom_call.1} parent=1 // pred_check
      _
    $region51: #{tpu_custom_call.1} parent=1 // pred_check_branch
      %687 = sbr.rel (0) target = $region53
    $region52: #{tpu_custom_call.1} parent=1 // pred_region
      %689 = vsyncadd [#allocation5], 0
      %s690 = sshll.u32 [#allocation11], 4
      %s691 = int_to_ptr.vmem [resolvable:$true] %s690
      %s692 = sshll.u32 %s8, 4
      %s693 = int_to_ptr.hbm [resolvable:$true] %s692
      %698 = dma.vmem_to_hbm [thread:$0]  %s691, 1024, %s693, [#allocation5], 128, 128, 8
    $region53: #{tpu_custom_call.1} parent=1 // pred_fallthru
      _
    // Predicated region
    $region54: #{tpu_custom_call.1} parent=1 // pred_check
      _
    $region55: #{tpu_custom_call.1} parent=1 // pred_check_branch
      %700 = sbr.rel (0) target = $region57
    $region56: #{tpu_custom_call.1} parent=1 // pred_region
      %702 = vsyncadd [#allocation13], 0
      %s704 = sshll.u32 [#allocation12], 4
      %s705 = int_to_ptr.vmem [resolvable:$true] %s704
      %s706 = sshll.u32 %s9, 4
      %s707 = int_to_ptr.hbm [resolvable:$true] %s706
      %709 = dma.vmem_to_hbm [thread:$0]  %s705, 128, %s707, [#allocation13]
    $region57: #{tpu_custom_call.1} parent=1 // pred_fallthru
      _
    // Predicated region
    $region58: #{tpu_custom_call.1} parent=1 // pred_check
      _
    $region59: #{tpu_custom_call.1} parent=1 // pred_check_branch
      %711 = sbr.rel (0) target = $region61
    $region60: #{tpu_custom_call.1} parent=1 // pred_region
      %713 = dma.done [#allocation5], 1024
    $region61: #{tpu_custom_call.1} parent=1 // pred_fallthru
      _
    // Predicated region
    $region62: #{tpu_custom_call.1} parent=1 // pred_check
      _
    $region63: #{tpu_custom_call.1} parent=1 // pred_check_branch
      %715 = sbr.rel (0) target = $region65
    $region64: #{tpu_custom_call.1} parent=1 // pred_region
      %717 = dma.done [#allocation13], 128
    $region65: #{tpu_custom_call.1} parent=1 // pred_fallthru
      _
    %718 = vsyncpa [#allocation4], 1
    %719 = vsyncpa [#allocation7], 1
    %720 = vsyncpa [#allocation10], 1
    %721 = vsyncpa [#allocation5], 1
    %722 = vsyncpa [#allocation13], 1

</llo_original>
